<compile_context>
chip_gen: v5e
topology: v5e:2x2
jax: 0.10.0
libtpu: 0.0.40
codegen_flags: <defaults>
</compile_context>

<pallas_src>
import functools

import jax
import jax.numpy as jnp
from jax.experimental import pallas as pl
from jax.experimental.pallas import tpu as pltpu


def _round_up(a, m):
    return ((a + m - 1) // m) * m


def _attention_pooling_kernel(x_ref, w_ref, b_ref, v_ref, out_ref, *, s_valid):
    # x_ref:  (TB, S, D)  batch tile of the input, streaming dtype (bf16/f32)
    # w_ref:  (D, H)      projection weight, already transposed, streaming dtype
    # b_ref:  (1, H)      projection bias, f32
    # v_ref:  (1, H)      attention vector, f32
    # out_ref:(TB, D)     pooled output, f32
    TB, S, D = x_ref.shape
    H = w_ref.shape[1]

    x_c = x_ref[...]                                   # (TB, S, D)
    w_c = w_ref[...]                                   # (D, H)
    b = b_ref[...].astype(jnp.float32)                 # (1, H)
    v = v_ref[...].astype(jnp.float32)                 # (1, H)

    # --- Projection: ONE MXU matmul over all TB*S rows (f32 accumulation) ---
    x2d = x_c.reshape(TB * S, D)                       # layout no-op (aligned S)
    proj = jnp.dot(x2d, w_c, preferred_element_type=jnp.float32)
    x_proj = jnp.tanh(proj + b).reshape(TB, S, H)      # (TB, S, H) f32

    # --- Scores: VPU multiply + lane (XLU) reduce (no N=1 MXU matmul) -------
    scores = jnp.sum(x_proj * v.reshape(1, 1, H), axis=-1, keepdims=True)  # (TB,S,1)

    # --- Mask padded sequence positions before the softmax -------------------
    if s_valid < S:
        seq = jax.lax.broadcasted_iota(jnp.int32, (TB, S, 1), 1)
        scores = jnp.where(seq < s_valid, scores, -1e30)

    # --- Softmax over the sequence axis (sublane reduce), exact divide ------
    m = jnp.max(scores, axis=1, keepdims=True)         # (TB, 1, 1)
    e = jnp.exp(scores - m)                            # (TB, S, 1)
    weights = e / jnp.sum(e, axis=1, keepdims=True)    # (TB, S, 1)

    # --- Weighted sum over S: lane broadcast + sublane reduce, f32 ----------
    pooled = jnp.sum(x_c.astype(jnp.float32) * weights, axis=1)  # (TB, D)
    out_ref[...] = pooled.astype(out_ref.dtype)


def attention_pooling(x, w_t, b, v, *, compute_dtype=jnp.bfloat16, tb=None):
    """x: (B, S, D); w_t: (D, H) = Linear.weight.T; b: (H,); v: (H,) -> (B, D) f32."""
    B, S, D = x.shape
    H = w_t.shape[1]

    itemsize = jnp.dtype(compute_dtype).itemsize
    s_pack = 8 * (4 // itemsize)          # sublane packing: 8 (f32) / 16 (bf16)
    S_pad = _round_up(S, s_pack)
    D_pad = _round_up(D, 128)             # lane-dense x tiles and output stores
    H_pad = _round_up(H, 128)             # lane-dense projection tiles

    # Pad feature / hidden / sequence dims (all no-ops at aligned shapes).
    if (S_pad, D_pad) != (S, D):
        x = jnp.pad(x, ((0, 0), (0, S_pad - S), (0, D_pad - D)))
    if (D_pad, H_pad) != (D, H):
        w_t = jnp.pad(w_t, ((0, D_pad - D), (0, H_pad - H)))
    if H_pad != H:
        b = jnp.pad(b, (0, H_pad - H))
        v = jnp.pad(v, (0, H_pad - H))

    x_c = x.astype(compute_dtype)
    w_c = w_t.astype(compute_dtype)
    b2 = b.reshape(1, H_pad).astype(jnp.float32)
    v2 = v.reshape(1, H_pad).astype(jnp.float32)

    # VMEM bytes live per batch row per grid step: double-buffered x tile,
    # f32 temporaries (x_proj, upcast x / x*weights), double-buffered out row.
    bytes_per_row = (
        2 * S_pad * D_pad * itemsize
        + S_pad * H_pad * 4
        + 2 * S_pad * D_pad * 4
        + 2 * D_pad * 4
    )

    if tb is None:
        if B <= 8:
            tb = B                                    # single tiny tile
        else:
            target = 16 * 1024 * 1024                 # per-step budget, v5e..v7x safe
            tb = max(8, min(1024, (target // bytes_per_row) // 8 * 8))
            # Keep >= 2 grid steps so the "parallel" batch axis can occupy both
            # v7x TensorCores (and overlaps DMA with compute everywhere).
            tb = min(tb, _round_up((B + 1) // 2, 8))
    nb = pl.cdiv(B, tb)
    b_pad = nb * tb
    if b_pad != B:
        # Zero batch rows give finite softmax and zero pooled output; sliced off.
        x_c = jnp.pad(x_c, ((0, b_pad - B), (0, 0), (0, 0)))

    weight_bytes = 2 * (D_pad * H_pad * itemsize + 2 * H_pad * 4)
    vmem_limit = int(
        min(max(tb * bytes_per_row + weight_bytes + (2 << 20), 8 << 20), 48 << 20)
    )

    kernel = functools.partial(_attention_pooling_kernel, s_valid=S)

    def build(single_buffer_consts):
        const_kw = (
            dict(pipeline_mode=pl.Buffered(1)) if single_buffer_consts else {}
        )
        return pl.pallas_call(
            kernel,
            out_shape=jax.ShapeDtypeStruct((b_pad, D_pad), jnp.float32),
            grid_spec=pltpu.PrefetchScalarGridSpec(
                num_scalar_prefetch=0,
                grid=(nb,),
                in_specs=[
                    pl.BlockSpec((tb, S_pad, D_pad), lambda bi: (bi, 0, 0)),
                    pl.BlockSpec((D_pad, H_pad), lambda bi: (0, 0), **const_kw),
                    pl.BlockSpec((1, H_pad), lambda bi: (0, 0), **const_kw),
                    pl.BlockSpec((1, H_pad), lambda bi: (0, 0), **const_kw),
                ],
                out_specs=pl.BlockSpec((tb, D_pad), lambda bi: (bi, 0)),
            ),
            compiler_params=pltpu.CompilerParams(
                dimension_semantics=("parallel",),
                vmem_limit_bytes=vmem_limit,
            ),
        )

    try:
        out = build(True)(x_c, w_c, b2, v2)
    except Exception:
        # Fallback for JAX versions without BlockSpec pipeline_mode support.
        out = build(False)(x_c, w_c, b2, v2)

    return out[:B, :D]


def _reference(x, w_t, b, v):
    x_proj = jnp.tanh(jnp.einsum("bsd,dh->bsh", x, w_t) + b)
    scores = jnp.einsum("bsh,h->bs", x_proj, v)
    weights = jax.nn.softmax(scores, axis=1)
    return jnp.sum(x * weights[..., None], axis=1)


if __name__ == "__main__":
    # Small shapes consistent with the module: batch=2, seq=8, input_dim=32,
    # hidden_dim=32.
    B, S, D_in, H = 2, 8, 32, 32

    key = jax.random.PRNGKey(0)
    kx, kw, kb, kv = jax.random.split(key, 4)

    x = jax.random.normal(kx, (B, S, D_in), dtype=jnp.float32)
    w = jax.random.normal(kw, (H, D_in), dtype=jnp.float32) * 0.1  # Linear.weight (H, D_in)
    b = jax.random.normal(kb, (H,), dtype=jnp.float32) * 0.1       # Linear.bias   (H,)
    v = jax.random.normal(kv, (H,), dtype=jnp.float32)             # attention vector
    w_t = w.T                                                      # (D_in, H)

    ref = _reference(x, w_t, b, v)

    # f32 streaming path (tighter check; also exercises D/H lane padding).
    out_f32 = jax.block_until_ready(
        attention_pooling(x, w_t, b, v, compute_dtype=jnp.float32))
    assert out_f32.shape == (B, D_in) and out_f32.dtype == jnp.float32
    assert jnp.allclose(out_f32, ref, atol=2e-2, rtol=2e-2), (
        f"f32 path max abs diff {jnp.max(jnp.abs(out_f32 - ref))}")

    # Default bf16 streaming path (performance configuration; also exercises
    # the padded-sequence masking since S=8 < S_pad=16 for bf16 packing).
    out_bf16 = jax.block_until_ready(attention_pooling(x, w_t, b, v))
    assert out_bf16.shape == (B, D_in) and out_bf16.dtype == jnp.float32
    assert jnp.allclose(out_bf16, ref, atol=6e-2, rtol=6e-2), (
        f"bf16 path max abs diff {jnp.max(jnp.abs(out_bf16 - ref))}")

    # Multi-grid-step + batch-padding path (nb >= 2, batch not a tile multiple).
    B2 = 20
    x2 = jax.random.normal(jax.random.PRNGKey(1), (B2, S, D_in), dtype=jnp.float32)
    ref2 = _reference(x2, w_t, b, v)

    out2_f32 = jax.block_until_ready(
        attention_pooling(x2, w_t, b, v, compute_dtype=jnp.float32))
    assert out2_f32.shape == (B2, D_in)
    assert jnp.allclose(out2_f32, ref2, atol=2e-2, rtol=2e-2), (
        f"tiled f32 path max abs diff {jnp.max(jnp.abs(out2_f32 - ref2))}")

    out2_bf16 = jax.block_until_ready(attention_pooling(x2, w_t, b, v))
    assert out2_bf16.shape == (B2, D_in)
    assert jnp.allclose(out2_bf16, ref2, atol=6e-2, rtol=6e-2), (
        f"tiled bf16 path max abs diff {jnp.max(jnp.abs(out2_bf16 - ref2))}")

    print("KERNEL_OK")
</pallas_src>

<mosaic_0001>
module attributes {stable_mosaic.version = 11 : i64} {
  func.func @_attention_pooling_kernel(%arg0: i32, %arg1: memref<2x8x128xf32, #tpu.memory_space<vmem>>, %arg2: memref<128x128xf32, #tpu.memory_space<vmem>>, %arg3: memref<1x128xf32, #tpu.memory_space<vmem>>, %arg4: memref<1x128xf32, #tpu.memory_space<vmem>>, %arg5: memref<2x128xf32, #tpu.memory_space<vmem>>) attributes {dimension_semantics = [#tpu.dimension_semantics<parallel>], iteration_bounds = array<i64: 1>, scalar_prefetch = 0 : i64, scratch_operands = 0 : i64, tpu.core_type = #tpu.core_type<tc>, window_params = [{transform_indices = @transform_0, window_bounds = array<i64: 2, 8, 128>}, {pipeline_mode = #tpu.pipeline_mode<synchronous>, transform_indices = @transform_1, window_bounds = array<i64: 128, 128>}, {pipeline_mode = #tpu.pipeline_mode<synchronous>, transform_indices = @transform_2, window_bounds = array<i64: 1, 128>}, {pipeline_mode = #tpu.pipeline_mode<synchronous>, transform_indices = @transform_3, window_bounds = array<i64: 1, 128>}, {transform_indices = @transform_4, window_bounds = array<i64: 2, 128>}]} {
    %c0 = arith.constant 0 : index
    %c0_0 = arith.constant 0 : index
    %c0_1 = arith.constant 0 : index
    %0 = vector.load %arg1[%c0, %c0_0, %c0_1] : memref<2x8x128xf32, #tpu.memory_space<vmem>>, vector<2x8x128xf32>
    %c0_2 = arith.constant 0 : index
    %c0_3 = arith.constant 0 : index
    %1 = vector.load %arg2[%c0_2, %c0_3] : memref<128x128xf32, #tpu.memory_space<vmem>>, vector<128x128xf32>
    %c0_4 = arith.constant 0 : index
    %c0_5 = arith.constant 0 : index
    %2 = vector.load %arg3[%c0_4, %c0_5] : memref<1x128xf32, #tpu.memory_space<vmem>>, vector<1x128xf32>
    %c0_6 = arith.constant 0 : index
    %c0_7 = arith.constant 0 : index
    %3 = vector.load %arg4[%c0_6, %c0_7] : memref<1x128xf32, #tpu.memory_space<vmem>>, vector<1x128xf32>
    %4 = vector.shape_cast %0 : vector<2x8x128xf32> to vector<16x128xf32>
    %cst = arith.constant dense<0.000000e+00> : vector<16x128xf32>
    %5 = tpu.matmul %4, %1, %cst {dimension_numbers = #tpu.dot_dimension_numbers<[1], [0], [0], [1], [0, 0, 1, 1], [], []>} : vector<16x128xf32>, vector<128x128xf32>, vector<16x128xf32> -> vector<16x128xf32>
    %6 = vector.broadcast %2 : vector<1x128xf32> to vector<16x128xf32>
    %7 = arith.addf %5, %6 : vector<16x128xf32>
    %8 = math.tanh %7 : vector<16x128xf32>
    %9 = vector.shape_cast %8 : vector<16x128xf32> to vector<2x8x128xf32>
    %10 = vector.shape_cast %3 : vector<1x128xf32> to vector<1x1x128xf32>
    %11 = vector.broadcast %10 : vector<1x1x128xf32> to vector<2x8x128xf32>
    %12 = arith.mulf %9, %11 : vector<2x8x128xf32>
    %cst_8 = arith.constant dense<0.000000e+00> : vector<2x8xf32>
    %13 = vector.multi_reduction <add>, %12, %cst_8 [2] : vector<2x8x128xf32> to vector<2x8xf32>
    %14 = vector.shape_cast %13 : vector<2x8xf32> to vector<2x8x1xf32>
    %cst_9 = arith.constant dense<0xFF800000> : vector<2x1xf32>
    %15 = vector.multi_reduction <maximumf>, %14, %cst_9 [1] : vector<2x8x1xf32> to vector<2x1xf32>
    %16 = vector.shape_cast %15 : vector<2x1xf32> to vector<2x1x1xf32>
    %17 = vector.broadcast %16 : vector<2x1x1xf32> to vector<2x8x1xf32>
    %18 = arith.subf %14, %17 : vector<2x8x1xf32>
    %19 = math.exp %18 : vector<2x8x1xf32>
    %cst_10 = arith.constant dense<0.000000e+00> : vector<2x1xf32>
    %20 = vector.multi_reduction <add>, %19, %cst_10 [1] : vector<2x8x1xf32> to vector<2x1xf32>
    %21 = vector.shape_cast %20 : vector<2x1xf32> to vector<2x1x1xf32>
    %22 = vector.broadcast %21 : vector<2x1x1xf32> to vector<2x8x1xf32>
    %23 = arith.divf %19, %22 : vector<2x8x1xf32>
    %24 = vector.broadcast %23 : vector<2x8x1xf32> to vector<2x8x128xf32>
    %25 = arith.mulf %0, %24 : vector<2x8x128xf32>
    %cst_11 = arith.constant dense<0.000000e+00> : vector<2x128xf32>
    %26 = vector.multi_reduction <add>, %25, %cst_11 [1] : vector<2x8x128xf32> to vector<2x128xf32>
    %c0_12 = arith.constant 0 : index
    %c0_13 = arith.constant 0 : index
    %27 = vector.load %arg5[%c0_12, %c0_13] : memref<2x128xf32, #tpu.memory_space<vmem>>, vector<2x128xf32>
    tpu.vector_store %arg5[%c0_12, %c0_13], %26 {strides = array<i32>} : memref<2x128xf32, #tpu.memory_space<vmem>>, vector<2x128xf32>,
    return
  }
  func.func @transform_0(%arg0: i32) -> (i32, i32, i32) {
    %c0_i32 = arith.constant 0 : i32
    %c0_i32_0 = arith.constant 0 : i32
    %c0_i32_1 = arith.constant 0 : i32
    return %arg0, %c0_i32, %c0_i32_0 : i32, i32, i32
  }
  func.func @transform_1(%arg0: i32) -> (i32, i32) {
    %c0_i32 = arith.constant 0 : i32
    %c0_i32_0 = arith.constant 0 : i32
    %c0_i32_1 = arith.constant 0 : i32
    return %c0_i32, %c0_i32_0 : i32, i32
  }
  func.func @transform_2(%arg0: i32) -> (i32, i32) {
    %c0_i32 = arith.constant 0 : i32
    %c0_i32_0 = arith.constant 0 : i32
    %c0_i32_1 = arith.constant 0 : i32
    return %c0_i32, %c0_i32_0 : i32, i32
  }
  func.func @transform_3(%arg0: i32) -> (i32, i32) {
    %c0_i32 = arith.constant 0 : i32
    %c0_i32_0 = arith.constant 0 : i32
    %c0_i32_1 = arith.constant 0 : i32
    return %c0_i32, %c0_i32_0 : i32, i32
  }
  func.func @transform_4(%arg0: i32) -> (i32, i32) {
    %c0_i32 = arith.constant 0 : i32
    %c0_i32_0 = arith.constant 0 : i32
    return %arg0, %c0_i32 : i32, i32
  }
}

module attributes {stable_mosaic.version = 11 : i64} {
  func.func @_attention_pooling_kernel(%arg0: i32, %arg1: memref<2x8x128xf32, #tpu.memory_space<vmem>>, %arg2: memref<128x128xf32, #tpu.memory_space<vmem>>, %arg3: memref<1x128xf32, #tpu.memory_space<vmem>>, %arg4: memref<1x128xf32, #tpu.memory_space<vmem>>, %arg5: memref<2x128xf32, #tpu.memory_space<vmem>>) attributes {dimension_semantics = [#tpu.dimension_semantics<parallel>], iteration_bounds = array<i64: 1>, scalar_prefetch = 0 : i64, scratch_operands = 0 : i64, tpu.core_type = #tpu.core_type<tc>, window_params = [{transform_indices = @transform_0, window_bounds = array<i64: 2, 8, 128>}, {pipeline_mode = #tpu.pipeline_mode<synchronous>, transform_indices = @transform_1, window_bounds = array<i64: 128, 128>}, {pipeline_mode = #tpu.pipeline_mode<synchronous>, transform_indices = @transform_2, window_bounds = array<i64: 1, 128>}, {pipeline_mode = #tpu.pipeline_mode<synchronous>, transform_indices = @transform_3, window_bounds = array<i64: 1, 128>}, {transform_indices = @transform_4, window_bounds = array<i64: 2, 128>}]} {
    %c0 = arith.constant 0 : index
    %c0_0 = arith.constant 0 : index
    %c0_1 = arith.constant 0 : index
    %0 = vector.load %arg1[%c0, %c0_0, %c0_1] : memref<2x8x128xf32, #tpu.memory_space<vmem>>, vector<2x8x128xf32>
    %c0_2 = arith.constant 0 : index
    %c0_3 = arith.constant 0 : index
    %1 = vector.load %arg2[%c0_2, %c0_3] : memref<128x128xf32, #tpu.memory_space<vmem>>, vector<128x128xf32>
    %c0_4 = arith.constant 0 : index
    %c0_5 = arith.constant 0 : index
    %2 = vector.load %arg3[%c0_4, %c0_5] : memref<1x128xf32, #tpu.memory_space<vmem>>, vector<1x128xf32>
    %c0_6 = arith.constant 0 : index
    %c0_7 = arith.constant 0 : index
    %3 = vector.load %arg4[%c0_6, %c0_7] : memref<1x128xf32, #tpu.memory_space<vmem>>, vector<1x128xf32>
    %4 = vector.shape_cast %0 : vector<2x8x128xf32> to vector<16x128xf32>
    %cst = arith.constant dense<0.000000e+00> : vector<16x128xf32>
    %5 = tpu.matmul %4, %1, %cst {dimension_numbers = #tpu.dot_dimension_numbers<[1], [0], [0], [1], [0, 0, 1, 1], [], []>} : vector<16x128xf32>, vector<128x128xf32>, vector<16x128xf32> -> vector<16x128xf32>
    %6 = vector.broadcast %2 : vector<1x128xf32> to vector<16x128xf32>
    %7 = arith.addf %5, %6 : vector<16x128xf32>
    %8 = math.tanh %7 : vector<16x128xf32>
    %9 = vector.shape_cast %8 : vector<16x128xf32> to vector<2x8x128xf32>
    %10 = vector.shape_cast %3 : vector<1x128xf32> to vector<1x1x128xf32>
    %11 = vector.broadcast %10 : vector<1x1x128xf32> to vector<2x8x128xf32>
    %12 = arith.mulf %9, %11 : vector<2x8x128xf32>
    %cst_8 = arith.constant dense<0.000000e+00> : vector<2x8xf32>
    %13 = vector.multi_reduction <add>, %12, %cst_8 [2] : vector<2x8x128xf32> to vector<2x8xf32>
    %14 = vector.shape_cast %13 : vector<2x8xf32> to vector<2x8x1xf32>
    %cst_9 = arith.constant dense<0xFF800000> : vector<2x1xf32>
    %15 = vector.multi_reduction <maximumf>, %14, %cst_9 [1] : vector<2x8x1xf32> to vector<2x1xf32>
    %16 = vector.shape_cast %15 : vector<2x1xf32> to vector<2x1x1xf32>
    %17 = vector.broadcast %16 : vector<2x1x1xf32> to vector<2x8x1xf32>
    %18 = arith.subf %14, %17 : vector<2x8x1xf32>
    %19 = math.exp %18 : vector<2x8x1xf32>
    %cst_10 = arith.constant dense<0.000000e+00> : vector<2x1xf32>
    %20 = vector.multi_reduction <add>, %19, %cst_10 [1] : vector<2x8x1xf32> to vector<2x1xf32>
    %21 = vector.shape_cast %20 : vector<2x1xf32> to vector<2x1x1xf32>
    %22 = vector.broadcast %21 : vector<2x1x1xf32> to vector<2x8x1xf32>
    %23 = arith.divf %19, %22 : vector<2x8x1xf32>
    %24 = vector.broadcast %23 : vector<2x8x1xf32> to vector<2x8x128xf32>
    %25 = arith.mulf %0, %24 : vector<2x8x128xf32>
    %cst_11 = arith.constant dense<0.000000e+00> : vector<2x128xf32>
    %26 = vector.multi_reduction <add>, %25, %cst_11 [1] : vector<2x8x128xf32> to vector<2x128xf32>
    %c0_12 = arith.constant 0 : index
    %c0_13 = arith.constant 0 : index
    %27 = vector.load %arg5[%c0_12, %c0_13] : memref<2x128xf32, #tpu.memory_space<vmem>>, vector<2x128xf32>
    tpu.vector_store %arg5[%c0_12, %c0_13], %26 {strides = array<i32>} : memref<2x128xf32, #tpu.memory_space<vmem>>, vector<2x128xf32>,
    return
  }
  func.func @transform_0(%arg0: i32) -> (i32, i32, i32) {
    %c0_i32 = arith.constant 0 : i32
    %c0_i32_0 = arith.constant 0 : i32
    %c0_i32_1 = arith.constant 0 : i32
    return %arg0, %c0_i32, %c0_i32_0 : i32, i32, i32
  }
  func.func @transform_1(%arg0: i32) -> (i32, i32) {
    %c0_i32 = arith.constant 0 : i32
    %c0_i32_0 = arith.constant 0 : i32
    %c0_i32_1 = arith.constant 0 : i32
    return %c0_i32, %c0_i32_0 : i32, i32
  }
  func.func @transform_2(%arg0: i32) -> (i32, i32) {
    %c0_i32 = arith.constant 0 : i32
    %c0_i32_0 = arith.constant 0 : i32
    %c0_i32_1 = arith.constant 0 : i32
    return %c0_i32, %c0_i32_0 : i32, i32
  }
  func.func @transform_3(%arg0: i32) -> (i32, i32) {
    %c0_i32 = arith.constant 0 : i32
    %c0_i32_0 = arith.constant 0 : i32
    %c0_i32_1 = arith.constant 0 : i32
    return %c0_i32, %c0_i32_0 : i32, i32
  }
  func.func @transform_4(%arg0: i32) -> (i32, i32) {
    %c0_i32 = arith.constant 0 : i32
    %c0_i32_0 = arith.constant 0 : i32
    return %arg0, %c0_i32 : i32, i32
  }
}

</mosaic_0001>

<llo_original>
// kernel: tpu_custom_call.1
$region0: #{tpu_custom_call.1}
  #allocation0 [shape = 'u32[]', space=smem, size = 0x4, offset = 0x4, fixed_abs, tag = 'smem constant byte address 0x4 - core index']
  #allocation1 [shape = 'u32[72,128]{1,0:T(1,128)}', space=vmem, size = 0x9000, scoped, tag = 'internal scratch']
  %s0 = inlined_call_operand.hbm [shape: f32[2,8,128], index: 0, kind: input, shape index: {}]
  %s1 = inlined_call_operand.hbm [shape: f32[128,128], index: 1, kind: input, shape index: {}]
  %s2 = inlined_call_operand.vmem [shape: f32[1,128], index: 2, kind: input, shape index: {}]
  %s3 = inlined_call_operand.vmem [shape: f32[1,128], index: 3, kind: input, shape index: {}]
  %s4 = inlined_call_operand.hbm [shape: f32[2,128], index: 4, kind: output, shape index: {}]
  %s5 = sld [smem:[#allocation0]]
  $region34: #{tpu_custom_call.1} parent=0
    _
  %s7 = ssub.s32 1, %s5
  %s8 = scalar_select 0, %s7, %s5
  $region1: #{tpu_custom_call.1} parent=0
    #allocation2 [shape = 'u8[8192]{0}', space=vmem, size = 0x2000, scoped, tag = 'input window, operand 0, single buffered']
    #allocation3 [shape = 's32[1]{0}', space=sflag, size = 0x4, scoped, tag = 'scoped memory for tpu_custom_call.1']
    #allocation4 [shape = 's32[1]{0}', space=sflag, size = 0x4, scoped, tag = 'scoped memory for tpu_custom_call.1']
    #allocation5 [shape = 'u8[65536]{0}', space=vmem, size = 0x10000, scoped, tag = 'input window, operand 1, single buffered']
    #allocation6 [shape = 's32[1]{0}', space=sflag, size = 0x4, scoped, tag = 'scoped memory for tpu_custom_call.1']
    #allocation7 [shape = 'u8[1024]{0}', space=vmem, size = 0x400, scoped, tag = 'output window, operand 0, single buffered']
    %9 = vsyncpa [#allocation3], 0
    %10 = vsyncpa [#allocation6], 0
    %11 = vsyncpa [#allocation4], 0
    // Predicated region
    $region2: #{tpu_custom_call.1} parent=1 // pred_check
      _
    $region3: #{tpu_custom_call.1} parent=1 // pred_check_branch
      %13 = sbr.rel (0) target = $region5
    $region4: #{tpu_custom_call.1} parent=1 // pred_region
      %15 = vsyncadd [#allocation3], 0
      %s16 = sshll.u32 %s0, 4
      %s17 = int_to_ptr.hbm [resolvable:$true] %s16
      %s18 = sshll.u32 [#allocation2], 4
      %s19 = int_to_ptr.vmem [resolvable:$true] %s18
      %24 = dma.hbm_to_vmem [thread:$0]  %s17, 256, %s19, [#allocation3], 128, 128, 8
    $region5: #{tpu_custom_call.1} parent=1 // pred_fallthru
      _
    // Predicated region
    $region6: #{tpu_custom_call.1} parent=1 // pred_check
      _
    $region7: #{tpu_custom_call.1} parent=1 // pred_check_branch
      %26 = sbr.rel (0) target = $region9
    $region8: #{tpu_custom_call.1} parent=1 // pred_region
      %28 = vsyncadd [#allocation6], 0
      %s29 = sshll.u32 %s1, 4
      %s30 = int_to_ptr.hbm [resolvable:$true] %s29
      %s31 = sshll.u32 [#allocation5], 4
      %s32 = int_to_ptr.vmem [resolvable:$true] %s31
      %37 = dma.hbm_to_vmem [thread:$0]  %s30, 2048, %s32, [#allocation6], 128, 128, 8
    $region9: #{tpu_custom_call.1} parent=1 // pred_fallthru
      _
    // Predicated region
    $region10: #{tpu_custom_call.1} parent=1 // pred_check
      _
    $region11: #{tpu_custom_call.1} parent=1 // pred_check_branch
      %39 = sbr.rel (0) target = $region13
    $region12: #{tpu_custom_call.1} parent=1 // pred_region
      _
    $region13: #{tpu_custom_call.1} parent=1 // pred_fallthru
      _
    // Predicated region
    $region14: #{tpu_custom_call.1} parent=1 // pred_check
      _
    $region15: #{tpu_custom_call.1} parent=1 // pred_check_branch
      %41 = sbr.rel (0) target = $region17
    $region16: #{tpu_custom_call.1} parent=1 // pred_region
      _
    $region17: #{tpu_custom_call.1} parent=1 // pred_fallthru
      _
    // Predicated region
    $region18: #{tpu_custom_call.1} parent=1 // pred_check
      _
    $region19: #{tpu_custom_call.1} parent=1 // pred_check_branch
      %43 = sbr.rel (0) target = $region21
    $region20: #{tpu_custom_call.1} parent=1 // pred_region
      %45 = dma.done [#allocation3], 256
    $region21: #{tpu_custom_call.1} parent=1 // pred_fallthru
      _
    // Predicated region
    $region22: #{tpu_custom_call.1} parent=1 // pred_check
      _
    $region23: #{tpu_custom_call.1} parent=1 // pred_check_branch
      %47 = sbr.rel (0) target = $region25
    $region24: #{tpu_custom_call.1} parent=1 // pred_region
      %49 = dma.done [#allocation6], 2048
    $region25: #{tpu_custom_call.1} parent=1 // pred_fallthru
      _
    %v50 = vld [vmem:[#allocation2] sm:$0xff]
    %v51 = vld [vmem:[#allocation2 + $0x8] sm:$0xff]
    %v52 = vld [vmem:[#allocation5] sm:$0xff]
    %v53 = vld [vmem:[#allocation5 + $0x8] sm:$0xff]
    %v54 = vld [vmem:[#allocation5 + $0x10] sm:$0xff]
    %v55 = vld [vmem:[#allocation5 + $0x18] sm:$0xff]
    %v56 = vld [vmem:[#allocation5 + $0x20] sm:$0xff]
    %v57 = vld [vmem:[#allocation5 + $0x28] sm:$0xff]
    %v58 = vld [vmem:[#allocation5 + $0x30] sm:$0xff]
    %v59 = vld [vmem:[#allocation5 + $0x38] sm:$0xff]
    %v60 = vld [vmem:[#allocation5 + $0x40] sm:$0xff]
    %v61 = vld [vmem:[#allocation5 + $0x48] sm:$0xff]
    %v62 = vld [vmem:[#allocation5 + $0x50] sm:$0xff]
    %v63 = vld [vmem:[#allocation5 + $0x58] sm:$0xff]
    %v64 = vld [vmem:[#allocation5 + $0x60] sm:$0xff]
    %v65 = vld [vmem:[#allocation5 + $0x68] sm:$0xff]
    %v66 = vld [vmem:[#allocation5 + $0x70] sm:$0xff]
    %v67 = vld [vmem:[#allocation5 + $0x78] sm:$0xff]
    %v68 = vld [vmem:[%s2] sm:$0x1]
    %v69 = vld [vmem:[%s3] sm:$0x1]
    %v71 = vperm.slane %v68, 0
    %73 = vmatpush.msra.mxu0 %v67
    %74 = vmatpush.msra.mxu0 %v66
    %75 = vmatpush.msra.mxu0 %v65
    %76 = vmatpush.msra.mxu0 %v64
    %77 = vmatpush.msra.mxu0 %v63
    %78 = vmatpush.msra.mxu0 %v62
    %79 = vmatpush.msra.mxu0 %v61
    %80 = vmatpush.msra.mxu0 %v60
    %81 = vmatpush.msra.mxu0 %v59
    %82 = vmatpush.msra.mxu0 %v58
    %83 = vmatpush.msra.mxu0 %v57
    %84 = vmatpush.msra.mxu0 %v56
    %85 = vmatpush.msra.mxu0 %v55
    %86 = vmatpush.msra.mxu0 %v54
    %87 = vmatpush.msra.mxu0 %v53
    %88 = vmatpush.msra.mxu0 %v52
    %89 = vmatmul.f32.gmra.mxu0 %v50
    %v90 = vpop.f32.mrf.mxu0
    %v91 = vadd.f32 %v71, %v90
    %92 = vmatmul.f32.gmra.mxu0 %v51
    %v93 = vpop.f32.mrf.mxu0
    %v94 = vadd.f32 %v71, %v93
    %95 = vdwg.mxu0
    %v96 = vtanh.pop %v91
    %v97 = vtanh.pop %v94
    %v99 = vperm.slane %v69, 0
    %v101 = vmul.f32 %v96, %v99
    %v102 = vmul.f32 %v97, %v99
    %103 = vadd.xlane.f32.xlu0 %v101
    %v104 = vpop.xlane.xlu0 %103
    %105 = vadd.xlane.f32.xlu0 %v102
    %v106 = vpop.xlane.xlu0 %105
    %v107 = vrot.slane %v104, 4
    %v108 = vmax.f32 %v104, %v107
    %v109 = vrot.slane %v108, 2
    %v110 = vmax.f32 %v108, %v109
    %v111 = vrot.slane %v110, 1
    %v112 = vmax.f32 %v110, %v111
    %v113 = vrot.slane %v106, 4
    %v114 = vmax.f32 %v106, %v113
    %v115 = vrot.slane %v114, 2
    %v116 = vmax.f32 %v114, %v115
    %v117 = vrot.slane %v116, 1
    %v118 = vmax.f32 %v116, %v117
    %v119 = vsub.f32 %v104, %v112
    %v120 = vsub.f32 %v106, %v118
    %v121 = vmul.f32 %v119, 1.442695
    %v122 = vpow.pop %v121
    %v123 = vmul.f32 %v120, 1.442695
    %v124 = vpow.pop %v123
    %v125 = vrot.slane %v122, 4
    %v126 = vadd.f32 %v122, %v125
    %v127 = vrot.slane %v126, 2
    %v128 = vadd.f32 %v126, %v127
    %v129 = vrot.slane %v128, 1
    %v130 = vadd.f32 %v128, %v129
    %v131 = vrot.slane %v124, 4
    %v132 = vadd.f32 %v124, %v131
    %v133 = vrot.slane %v132, 2
    %v134 = vadd.f32 %v132, %v133
    %v135 = vrot.slane %v134, 1
    %v136 = vadd.f32 %v134, %v135
    %v137 = vrcp.pop %v130
    %v138 = vmul.f32 %v130, %v137
    %v139 = vsub.f32 1.0, %v138
    %v140 = vmul.f32 %v137, %v139
    %v141 = vadd.f32 %v137, %v140
    %vm142 = vweird.f32 %v130
    %vm143 = vweird.f32 %v137
    %vm144 = vmor %vm142, %vm143
    %v145 = vsel %vm144, %v137, %v141
    %v146 = vand.u32 2147483647, %v130
    %vm147 = vcmp.eq.f32.partialorder %v146, 8.507059e+37
    %v148 = vand.u32 %v130, 2147483648
    %v149 = vor.u32 1.1754944e-38, %v148
    %v150 = vsel %vm147, %v149, %v145
    %v151 = vmul.f32 %v122, %v150
    %v152 = vrcp.pop %v136
    %v153 = vmul.f32 %v136, %v152
    %v154 = vsub.f32 1.0, %v153
    %v155 = vmul.f32 %v152, %v154
    %v156 = vadd.f32 %v152, %v155
    %vm157 = vweird.f32 %v136
    %vm158 = vweird.f32 %v152
    %vm159 = vmor %vm157, %vm158
    %v160 = vsel %vm159, %v152, %v156
    %v161 = vand.u32 2147483647, %v136
    %vm162 = vcmp.eq.f32.partialorder %v161, 8.507059e+37
    %v163 = vand.u32 %v136, 2147483648
    %v164 = vor.u32 1.1754944e-38, %v163
    %v165 = vsel %vm162, %v164, %v160
    %v166 = vmul.f32 %v124, %v165
    %v167 = vmul.f32 %v50, %v151
    %v168 = vmul.f32 %v51, %v166
    %v169 = vrot.slane %v167, 4
    %v170 = vadd.f32 %v167, %v169
    %v171 = vrot.slane %v170, 2
    %v172 = vadd.f32 %v170, %v171
    %v173 = vrot.slane %v172, 1
    %v174 = vadd.f32 %v172, %v173
    %v175 = vrot.slane %v168, 4
    %v176 = vadd.f32 %v168, %v175
    %v177 = vrot.slane %v176, 2
    %v178 = vadd.f32 %v176, %v177
    %v179 = vrot.slane %v178, 1
    %v180 = vadd.f32 %v178, %v179
    %vm183 = vcmask 1041409
    %v184 = vsel %vm183, %v180, %v174
    %186 = vst [vmem:[#allocation7] sm:$0x3] %v184
    // Predicated region
    $region26: #{tpu_custom_call.1} parent=1 // pred_check
      _
    $region27: #{tpu_custom_call.1} parent=1 // pred_check_branch
      %188 = sbr.rel (0) target = $region29
    $region28: #{tpu_custom_call.1} parent=1 // pred_region
      %190 = vsyncadd [#allocation4], 0
      %s192 = sshll.u32 [#allocation7], 4
      %s193 = int_to_ptr.vmem [resolvable:$true] %s192
      %s194 = sshll.u32 %s4, 4
      %s195 = int_to_ptr.hbm [resolvable:$true] %s194
      %197 = dma.vmem_to_hbm [thread:$0]  %s193, 32, %s195, [#allocation4]
    $region29: #{tpu_custom_call.1} parent=1 // pred_fallthru
      _
    // Predicated region
    $region30: #{tpu_custom_call.1} parent=1 // pred_check
      _
    $region31: #{tpu_custom_call.1} parent=1 // pred_check_branch
      %199 = sbr.rel (0) target = $region33
    $region32: #{tpu_custom_call.1} parent=1 // pred_region
      %201 = dma.done [#allocation4], 32
    $region33: #{tpu_custom_call.1} parent=1 // pred_fallthru
      _
    %202 = vsyncpa [#allocation3], 1
    %203 = vsyncpa [#allocation6], 1
    %204 = vsyncpa [#allocation4], 1

// kernel: tpu_custom_call.1
$region0: #{tpu_custom_call.1}
  #allocation0 [shape = 'u32[]', space=smem, size = 0x4, offset = 0x4, fixed_abs, tag = 'smem constant byte address 0x4 - core index']
  #allocation1 [shape = 'u32[72,128]{1,0:T(1,128)}', space=vmem, size = 0x9000, scoped, tag = 'internal scratch']
  %s0 = inlined_call_operand.hbm [shape: f32[2,8,128], index: 0, kind: input, shape index: {}]
  %s1 = inlined_call_operand.hbm [shape: f32[128,128], index: 1, kind: input, shape index: {}]
  %s2 = inlined_call_operand.vmem [shape: f32[1,128], index: 2, kind: input, shape index: {}]
  %s3 = inlined_call_operand.vmem [shape: f32[1,128], index: 3, kind: input, shape index: {}]
  %s4 = inlined_call_operand.hbm [shape: f32[2,128], index: 4, kind: output, shape index: {}]
  %s5 = sld [smem:[#allocation0]]
  $region34: #{tpu_custom_call.1} parent=0
    _
  %s7 = ssub.s32 1, %s5
  %s8 = scalar_select 0, %s7, %s5
  $region1: #{tpu_custom_call.1} parent=0
    #allocation2 [shape = 'u8[8192]{0}', space=vmem, size = 0x2000, scoped, tag = 'input window, operand 0, single buffered']
    #allocation3 [shape = 's32[1]{0}', space=sflag, size = 0x4, scoped, tag = 'scoped memory for tpu_custom_call.1']
    #allocation4 [shape = 's32[1]{0}', space=sflag, size = 0x4, scoped, tag = 'scoped memory for tpu_custom_call.1']
    #allocation5 [shape = 'u8[65536]{0}', space=vmem, size = 0x10000, scoped, tag = 'input window, operand 1, single buffered']
    #allocation6 [shape = 's32[1]{0}', space=sflag, size = 0x4, scoped, tag = 'scoped memory for tpu_custom_call.1']
    #allocation7 [shape = 'u8[1024]{0}', space=vmem, size = 0x400, scoped, tag = 'output window, operand 0, single buffered']
    %9 = vsyncpa [#allocation3], 0
    %10 = vsyncpa [#allocation6], 0
    %11 = vsyncpa [#allocation4], 0
    // Predicated region
    $region2: #{tpu_custom_call.1} parent=1 // pred_check
      _
    $region3: #{tpu_custom_call.1} parent=1 // pred_check_branch
      %13 = sbr.rel (0) target = $region5
    $region4: #{tpu_custom_call.1} parent=1 // pred_region
      %15 = vsyncadd [#allocation3], 0
      %s16 = sshll.u32 %s0, 4
      %s17 = int_to_ptr.hbm [resolvable:$true] %s16
      %s18 = sshll.u32 [#allocation2], 4
      %s19 = int_to_ptr.vmem [resolvable:$true] %s18
      %24 = dma.hbm_to_vmem [thread:$0]  %s17, 256, %s19, [#allocation3], 128, 128, 8
    $region5: #{tpu_custom_call.1} parent=1 // pred_fallthru
      _
    // Predicated region
    $region6: #{tpu_custom_call.1} parent=1 // pred_check
      _
    $region7: #{tpu_custom_call.1} parent=1 // pred_check_branch
      %26 = sbr.rel (0) target = $region9
    $region8: #{tpu_custom_call.1} parent=1 // pred_region
      %28 = vsyncadd [#allocation6], 0
      %s29 = sshll.u32 %s1, 4
      %s30 = int_to_ptr.hbm [resolvable:$true] %s29
      %s31 = sshll.u32 [#allocation5], 4
      %s32 = int_to_ptr.vmem [resolvable:$true] %s31
      %37 = dma.hbm_to_vmem [thread:$0]  %s30, 2048, %s32, [#allocation6], 128, 128, 8
    $region9: #{tpu_custom_call.1} parent=1 // pred_fallthru
      _
    // Predicated region
    $region10: #{tpu_custom_call.1} parent=1 // pred_check
      _
    $region11: #{tpu_custom_call.1} parent=1 // pred_check_branch
      %39 = sbr.rel (0) target = $region13
    $region12: #{tpu_custom_call.1} parent=1 // pred_region
      _
    $region13: #{tpu_custom_call.1} parent=1 // pred_fallthru
      _
    // Predicated region
    $region14: #{tpu_custom_call.1} parent=1 // pred_check
      _
    $region15: #{tpu_custom_call.1} parent=1 // pred_check_branch
      %41 = sbr.rel (0) target = $region17
    $region16: #{tpu_custom_call.1} parent=1 // pred_region
      _
    $region17: #{tpu_custom_call.1} parent=1 // pred_fallthru
      _
    // Predicated region
    $region18: #{tpu_custom_call.1} parent=1 // pred_check
      _
    $region19: #{tpu_custom_call.1} parent=1 // pred_check_branch
      %43 = sbr.rel (0) target = $region21
    $region20: #{tpu_custom_call.1} parent=1 // pred_region
      %45 = dma.done [#allocation3], 256
    $region21: #{tpu_custom_call.1} parent=1 // pred_fallthru
      _
    // Predicated region
    $region22: #{tpu_custom_call.1} parent=1 // pred_check
      _
    $region23: #{tpu_custom_call.1} parent=1 // pred_check_branch
      %47 = sbr.rel (0) target = $region25
    $region24: #{tpu_custom_call.1} parent=1 // pred_region
      %49 = dma.done [#allocation6], 2048
    $region25: #{tpu_custom_call.1} parent=1 // pred_fallthru
      _
    %v50 = vld [vmem:[#allocation2] sm:$0xff]
    %v51 = vld [vmem:[#allocation2 + $0x8] sm:$0xff]
    %v52 = vld [vmem:[#allocation5] sm:$0xff]
    %v53 = vld [vmem:[#allocation5 + $0x8] sm:$0xff]
    %v54 = vld [vmem:[#allocation5 + $0x10] sm:$0xff]
    %v55 = vld [vmem:[#allocation5 + $0x18] sm:$0xff]
    %v56 = vld [vmem:[#allocation5 + $0x20] sm:$0xff]
    %v57 = vld [vmem:[#allocation5 + $0x28] sm:$0xff]
    %v58 = vld [vmem:[#allocation5 + $0x30] sm:$0xff]
    %v59 = vld [vmem:[#allocation5 + $0x38] sm:$0xff]
    %v60 = vld [vmem:[#allocation5 + $0x40] sm:$0xff]
    %v61 = vld [vmem:[#allocation5 + $0x48] sm:$0xff]
    %v62 = vld [vmem:[#allocation5 + $0x50] sm:$0xff]
    %v63 = vld [vmem:[#allocation5 + $0x58] sm:$0xff]
    %v64 = vld [vmem:[#allocation5 + $0x60] sm:$0xff]
    %v65 = vld [vmem:[#allocation5 + $0x68] sm:$0xff]
    %v66 = vld [vmem:[#allocation5 + $0x70] sm:$0xff]
    %v67 = vld [vmem:[#allocation5 + $0x78] sm:$0xff]
    %v68 = vld [vmem:[%s2] sm:$0x1]
    %v69 = vld [vmem:[%s3] sm:$0x1]
    %v71 = vperm.slane %v68, 0
    %73 = vmatpush.msra.mxu0 %v67
    %74 = vmatpush.msra.mxu0 %v66
    %75 = vmatpush.msra.mxu0 %v65
    %76 = vmatpush.msra.mxu0 %v64
    %77 = vmatpush.msra.mxu0 %v63
    %78 = vmatpush.msra.mxu0 %v62
    %79 = vmatpush.msra.mxu0 %v61
    %80 = vmatpush.msra.mxu0 %v60
    %81 = vmatpush.msra.mxu0 %v59
    %82 = vmatpush.msra.mxu0 %v58
    %83 = vmatpush.msra.mxu0 %v57
    %84 = vmatpush.msra.mxu0 %v56
    %85 = vmatpush.msra.mxu0 %v55
    %86 = vmatpush.msra.mxu0 %v54
    %87 = vmatpush.msra.mxu0 %v53
    %88 = vmatpush.msra.mxu0 %v52
    %89 = vmatmul.f32.gmra.mxu0 %v50
    %v90 = vpop.f32.mrf.mxu0
    %v91 = vadd.f32 %v71, %v90
    %92 = vmatmul.f32.gmra.mxu0 %v51
    %v93 = vpop.f32.mrf.mxu0
    %v94 = vadd.f32 %v71, %v93
    %95 = vdwg.mxu0
    %v96 = vtanh.pop %v91
    %v97 = vtanh.pop %v94
    %v99 = vperm.slane %v69, 0
    %v101 = vmul.f32 %v96, %v99
    %v102 = vmul.f32 %v97, %v99
    %103 = vadd.xlane.f32.xlu0 %v101
    %v104 = vpop.xlane.xlu0 %103
    %105 = vadd.xlane.f32.xlu0 %v102
    %v106 = vpop.xlane.xlu0 %105
    %v107 = vrot.slane %v104, 4
    %v108 = vmax.f32 %v104, %v107
    %v109 = vrot.slane %v108, 2
    %v110 = vmax.f32 %v108, %v109
    %v111 = vrot.slane %v110, 1
    %v112 = vmax.f32 %v110, %v111
    %v113 = vrot.slane %v106, 4
    %v114 = vmax.f32 %v106, %v113
    %v115 = vrot.slane %v114, 2
    %v116 = vmax.f32 %v114, %v115
    %v117 = vrot.slane %v116, 1
    %v118 = vmax.f32 %v116, %v117
    %v119 = vsub.f32 %v104, %v112
    %v120 = vsub.f32 %v106, %v118
    %v121 = vmul.f32 %v119, 1.442695
    %v122 = vpow.pop %v121
    %v123 = vmul.f32 %v120, 1.442695
    %v124 = vpow.pop %v123
    %v125 = vrot.slane %v122, 4
    %v126 = vadd.f32 %v122, %v125
    %v127 = vrot.slane %v126, 2
    %v128 = vadd.f32 %v126, %v127
    %v129 = vrot.slane %v128, 1
    %v130 = vadd.f32 %v128, %v129
    %v131 = vrot.slane %v124, 4
    %v132 = vadd.f32 %v124, %v131
    %v133 = vrot.slane %v132, 2
    %v134 = vadd.f32 %v132, %v133
    %v135 = vrot.slane %v134, 1
    %v136 = vadd.f32 %v134, %v135
    %v137 = vrcp.pop %v130
    %v138 = vmul.f32 %v130, %v137
    %v139 = vsub.f32 1.0, %v138
    %v140 = vmul.f32 %v137, %v139
    %v141 = vadd.f32 %v137, %v140
    %vm142 = vweird.f32 %v130
    %vm143 = vweird.f32 %v137
    %vm144 = vmor %vm142, %vm143
    %v145 = vsel %vm144, %v137, %v141
    %v146 = vand.u32 2147483647, %v130
    %vm147 = vcmp.eq.f32.partialorder %v146, 8.507059e+37
    %v148 = vand.u32 %v130, 2147483648
    %v149 = vor.u32 1.1754944e-38, %v148
    %v150 = vsel %vm147, %v149, %v145
    %v151 = vmul.f32 %v122, %v150
    %v152 = vrcp.pop %v136
    %v153 = vmul.f32 %v136, %v152
    %v154 = vsub.f32 1.0, %v153
    %v155 = vmul.f32 %v152, %v154
    %v156 = vadd.f32 %v152, %v155
    %vm157 = vweird.f32 %v136
    %vm158 = vweird.f32 %v152
    %vm159 = vmor %vm157, %vm158
    %v160 = vsel %vm159, %v152, %v156
    %v161 = vand.u32 2147483647, %v136
    %vm162 = vcmp.eq.f32.partialorder %v161, 8.507059e+37
    %v163 = vand.u32 %v136, 2147483648
    %v164 = vor.u32 1.1754944e-38, %v163
    %v165 = vsel %vm162, %v164, %v160
    %v166 = vmul.f32 %v124, %v165
    %v167 = vmul.f32 %v50, %v151
    %v168 = vmul.f32 %v51, %v166
    %v169 = vrot.slane %v167, 4
    %v170 = vadd.f32 %v167, %v169
    %v171 = vrot.slane %v170, 2
    %v172 = vadd.f32 %v170, %v171
    %v173 = vrot.slane %v172, 1
    %v174 = vadd.f32 %v172, %v173
    %v175 = vrot.slane %v168, 4
    %v176 = vadd.f32 %v168, %v175
    %v177 = vrot.slane %v176, 2
    %v178 = vadd.f32 %v176, %v177
    %v179 = vrot.slane %v178, 1
    %v180 = vadd.f32 %v178, %v179
    %vm183 = vcmask 1041409
    %v184 = vsel %vm183, %v180, %v174
    %186 = vst [vmem:[#allocation7] sm:$0x3] %v184
    // Predicated region
    $region26: #{tpu_custom_call.1} parent=1 // pred_check
      _
    $region27: #{tpu_custom_call.1} parent=1 // pred_check_branch
      %188 = sbr.rel (0) target = $region29
    $region28: #{tpu_custom_call.1} parent=1 // pred_region
      %190 = vsyncadd [#allocation4], 0
      %s192 = sshll.u32 [#allocation7], 4
      %s193 = int_to_ptr.vmem [resolvable:$true] %s192
      %s194 = sshll.u32 %s4, 4
      %s195 = int_to_ptr.hbm [resolvable:$true] %s194
      %197 = dma.vmem_to_hbm [thread:$0]  %s193, 32, %s195, [#allocation4]
    $region29: #{tpu_custom_call.1} parent=1 // pred_fallthru
      _
    // Predicated region
    $region30: #{tpu_custom_call.1} parent=1 // pred_check
      _
    $region31: #{tpu_custom_call.1} parent=1 // pred_check_branch
      %199 = sbr.rel (0) target = $region33
    $region32: #{tpu_custom_call.1} parent=1 // pred_region
      %201 = dma.done [#allocation4], 32
    $region33: #{tpu_custom_call.1} parent=1 // pred_fallthru
      _
    %202 = vsyncpa [#allocation3], 1
    %203 = vsyncpa [#allocation6], 1
    %204 = vsyncpa [#allocation4], 1

</llo_original>
